<compile_context>
chip_gen: v6e
topology: v6e:2x2x1
jax: 0.10.0
libtpu: 0.0.40
codegen_flags: <defaults>
</compile_context>

<pallas_src>
import jax
import jax.numpy as jnp
from jax.experimental import pallas as pl
from jax.experimental.pallas import tpu as pltpu

SCALE = 4
_MXU_DTYPES = (jnp.float32, jnp.bfloat16, jnp.float16)


def _replication_matrix(w: int, dtype) -> jnp.ndarray:
    """One-hot R0 with shape (W, 4W); R0[w0, k] = 1 iff k // 4 == w0."""
    k = jnp.arange(SCALE * w)
    return (k[None, :] // SCALE == jnp.arange(w)[:, None]).astype(dtype)


def _store_replicated(o_ref, out4, b, h, ow4):
    """Write the (b, h, 4W) slab into all four 4W-wide lane slabs of o_ref."""
    if ow4 % 128 == 0:
        # Lane-aligned, unmasked slab stores (W % 32 == 0).
        for j in range(SCALE):
            o_ref[:, :, j * ow4:(j + 1) * ow4] = out4
    else:
        # Small W: assemble the full 16W row in-vreg, single store
        # (output block's last dim == full array dim, so the store stays legal).
        o_ref[...] = jnp.concatenate([out4] * SCALE, axis=-1)


def _upsample_mxu_kernel(x_ref, r_ref, o_ref):
    # x_ref: (B, H, W), r_ref: (W, 4W), o_ref: (B, H, 16W)
    b, h, w = x_ref.shape
    ow4 = SCALE * w
    x2 = x_ref[...].reshape(b * h, w)            # free relayout when H % 8 == 0
    # Exact even without f32 accumulation: R0 is one-hot, single contributor
    # per output column.
    out4 = jnp.dot(x2, r_ref[...], preferred_element_type=o_ref.dtype)
    _store_replicated(o_ref, out4.reshape(b, h, ow4), b, h, ow4)


def _upsample_vpu_kernel(x_ref, o_ref):
    # Fallback for non-{f32,bf16,f16} dtypes (ints, fp8): correctness first.
    # TODO(synk): the trailing-dim broadcast+reshape is a per-element lane
    # interleave (XLU-bound for int8 at large shapes); a one-hot-select or
    # strided-store formulation would be faster but is not needed here.
    x = x_ref[...]                                # (B, H, W)
    b, h, w = x.shape
    ow4 = SCALE * w
    rep = jnp.broadcast_to(x[:, :, :, None], (b, h, w, SCALE)).reshape(b, h, ow4)
    _store_replicated(o_ref, rep, b, h, ow4)


def _vmem_capacity_bytes() -> int:
    try:
        return int(pltpu.get_tpu_info().vmem_capacity_bytes)
    except Exception:
        return 64 * 1024 * 1024        # conservative (v7x-sized) fallback


def upsample_block(x, *, block_channels=None, vmem_limit_bytes=None):
    """x: (N, C, H, W) -> (N, C, 4H, 4W), nearest-neighbor (F.interpolate semantics)."""
    N, C, H, W = x.shape
    NC = N * C
    dtype = x.dtype
    itemsize = jnp.dtype(dtype).itemsize
    x_flat = x.reshape(NC, H, W)

    ow4 = SCALE * W                    # width of one replicated slab
    out_w = SCALE * ow4                # lane-dense flattened output row width
    mxu_ok = any(dtype == jnp.dtype(t) for t in _MXU_DTYPES)

    # --- generation-aware VMEM sizing -------------------------------------
    cap = _vmem_capacity_bytes()
    if vmem_limit_bytes is None:
        # ~96 MiB on 128-MiB parts (v5e/v6e), ~48 MiB on v7x (64 MiB physical).
        vmem_limit_bytes = min((cap * 3) // 4, 100 * 1024 * 1024)

    # Per-channel-per-step bytes: double-buffered input + double-buffered
    # output + generous allowance for the (B*H, 4W) matmul temp / store staging.
    per_chan = itemsize * H * (2 * W + 2 * out_w + 2 * ow4)
    # Block-size-independent residents: R's double buffer + internal scratch.
    fixed = (2 * W * ow4 * itemsize if mxu_ok else 0) + (2 << 20)
    budget = max(int(vmem_limit_bytes * 0.8) - fixed, per_chan)

    if block_channels is None:
        block_b = max(1, min(NC, budget // per_chan))
        # Prefer >= 8 grid steps (>= 4 per TensorCore on megacore parts) for
        # pipelining, but never shrink output blocks below ~1 MiB.
        min_steps = 8
        min_block_bytes = 1 << 20
        while pl.cdiv(NC, block_b) < min_steps:
            nb = (block_b + 1) // 2
            if nb == block_b or nb * H * out_w * itemsize < min_block_bytes:
                break
            block_b = nb
    else:
        block_b = max(1, min(NC, block_channels))

    grid = (pl.cdiv(NC, block_b),)     # ragged last block is masked by Pallas
    x_spec = pl.BlockSpec((block_b, H, W), lambda i: (i, 0, 0))
    out_spec = pl.BlockSpec((block_b, H, out_w), lambda i: (i, 0, 0))
    out_shape = jax.ShapeDtypeStruct((NC, H, out_w), dtype)

    cost = pl.CostEstimate(
        flops=(2 * NC * H * ow4 * W) if mxu_ok else 0,
        transcendentals=0,
        bytes_accessed=NC * H * W * itemsize * (1 + SCALE * SCALE)
        + (W * ow4 * itemsize if mxu_ok else 0),
    )
    params = pltpu.CompilerParams(
        dimension_semantics=("parallel",),
        vmem_limit_bytes=int(vmem_limit_bytes),
    )

    if mxu_ok:
        r = _replication_matrix(W, dtype)
        # Constant index_map -> R is fetched once and kept resident (no
        # per-step re-DMA); its double buffer is accounted for in `fixed`.
        r_spec = pl.BlockSpec((W, ow4), lambda i: (0, 0))
        out_flat = pl.pallas_call(
            _upsample_mxu_kernel,
            out_shape=out_shape,
            grid=grid,
            in_specs=[x_spec, r_spec],
            out_specs=out_spec,
            compiler_params=params,
            cost_estimate=cost,
        )(x_flat, r)
    else:
        out_flat = pl.pallas_call(
            _upsample_vpu_kernel,
            out_shape=out_shape,
            grid=grid,
            in_specs=[x_spec],
            out_specs=out_spec,
            compiler_params=params,
            cost_estimate=cost,
        )(x_flat)

    # (NC, H, 16W) -> (N, C, 4H, 4W): contiguous row-major reshape (free view).
    return out_flat.reshape(N, C, SCALE * H, SCALE * W)


if __name__ == "__main__":
    key = jax.random.PRNGKey(0)
    N, C, H, W = 2, 4, 16, 16
    x = jax.random.normal(key, (N, C, H, W), dtype=jnp.float32)

    out = jax.block_until_ready(upsample_block(x))

    # Reference: nearest-neighbor upsample via index arithmetic (PyTorch semantics).
    hs = jnp.arange(SCALE * H) // SCALE
    ws = jnp.arange(SCALE * W) // SCALE
    ref = x[:, :, hs, :][:, :, :, ws]
    assert out.shape == (N, C, SCALE * H, SCALE * W)
    assert jnp.array_equal(out, ref), "mismatch vs nearest-neighbor reference"

    print("KERNEL_OK")
</pallas_src>

<mosaic_0001>
module attributes {stable_mosaic.version = 11 : i64} {
  func.func @_upsample_mxu_kernel(%arg0: i32, %arg1: memref<8x16x16xf32, #tpu.memory_space<vmem>>, %arg2: memref<16x64xf32, #tpu.memory_space<vmem>>, %arg3: memref<8x16x256xf32, #tpu.memory_space<vmem>>) attributes {dimension_semantics = [#tpu.dimension_semantics<parallel>], iteration_bounds = array<i64: 1>, scalar_prefetch = 0 : i64, scratch_operands = 0 : i64, tpu.core_type = #tpu.core_type<tc>, window_params = [{transform_indices = @transform_0, window_bounds = array<i64: 8, 16, 16>}, {pipeline_mode = #tpu.pipeline_mode<synchronous>, transform_indices = @transform_1, window_bounds = array<i64: 16, 64>}, {transform_indices = @transform_2, window_bounds = array<i64: 8, 16, 256>}]} {
    %c0 = arith.constant 0 : index
    %c0_0 = arith.constant 0 : index
    %c0_1 = arith.constant 0 : index
    %0 = vector.load %arg1[%c0, %c0_0, %c0_1] : memref<8x16x16xf32, #tpu.memory_space<vmem>>, vector<8x16x16xf32>
    %1 = vector.shape_cast %0 : vector<8x16x16xf32> to vector<128x16xf32>
    %c0_2 = arith.constant 0 : index
    %c0_3 = arith.constant 0 : index
    %2 = vector.load %arg2[%c0_2, %c0_3] : memref<16x64xf32, #tpu.memory_space<vmem>>, vector<16x64xf32>
    %cst = arith.constant dense<0.000000e+00> : vector<128x64xf32>
    %3 = tpu.matmul %1, %2, %cst {dimension_numbers = #tpu.dot_dimension_numbers<[1], [0], [0], [1], [0, 0, 1, 1], [], []>} : vector<128x16xf32>, vector<16x64xf32>, vector<128x64xf32> -> vector<128x64xf32>
    %4 = vector.shape_cast %3 : vector<128x64xf32> to vector<8x16x64xf32>
    %5 = tpu.concatenate %4, %4, %4, %4 in 2 : vector<8x16x64xf32>, vector<8x16x64xf32>, vector<8x16x64xf32>, vector<8x16x64xf32> -> vector<8x16x256xf32>
    %c0_4 = arith.constant 0 : index
    %c0_5 = arith.constant 0 : index
    %c0_6 = arith.constant 0 : index
    %6 = vector.load %arg3[%c0_4, %c0_5, %c0_6] : memref<8x16x256xf32, #tpu.memory_space<vmem>>, vector<8x16x256xf32>
    tpu.vector_store %arg3[%c0_4, %c0_5, %c0_6], %5 {strides = array<i32>} : memref<8x16x256xf32, #tpu.memory_space<vmem>>, vector<8x16x256xf32>,
    return
  }
  func.func @transform_0(%arg0: i32) -> (i32, i32, i32) {
    %c0_i32 = arith.constant 0 : i32
    %c0_i32_0 = arith.constant 0 : i32
    %c0_i32_1 = arith.constant 0 : i32
    return %arg0, %c0_i32, %c0_i32_0 : i32, i32, i32
  }
  func.func @transform_1(%arg0: i32) -> (i32, i32) {
    %c0_i32 = arith.constant 0 : i32
    %c0_i32_0 = arith.constant 0 : i32
    %c0_i32_1 = arith.constant 0 : i32
    return %c0_i32, %c0_i32_0 : i32, i32
  }
  func.func @transform_2(%arg0: i32) -> (i32, i32, i32) {
    %c0_i32 = arith.constant 0 : i32
    %c0_i32_0 = arith.constant 0 : i32
    %c0_i32_1 = arith.constant 0 : i32
    return %arg0, %c0_i32, %c0_i32_0 : i32, i32, i32
  }
}

</mosaic_0001>

<llo_original>
// kernel: tpu_custom_call.1
$region0: #{tpu_custom_call.1}
  #allocation0 [shape = 'u32[]', space=smem, size = 0x4, offset = 0x4, fixed_abs, tag = 'smem constant byte address 0x4 - core index']
  #allocation1 [shape = 'u32[144,128]{1,0:T(1,128)}', space=vmem, size = 0x12000, scoped, tag = 'internal scratch']
  %s0 = inlined_call_operand.hbm [shape: f32[8,16,16], index: 0, kind: input, shape index: {}]
  %s1 = inlined_call_operand.hbm [shape: f32[16,64], index: 1, kind: input, shape index: {}]
  %s2 = inlined_call_operand.hbm [shape: f32[8,16,256], index: 2, kind: output, shape index: {}]
  %s3 = sld [smem:[#allocation0]]
  $region26: #{tpu_custom_call.1} parent=0
    _
  %s5 = ssub.s32 1, %s3
  %s6 = scalar_select 0, %s5, %s3
  $region1: #{tpu_custom_call.1} parent=0
    #allocation2 [shape = 'u8[65536]{0}', space=vmem, size = 0x10000, scoped, tag = 'input window, operand 0, single buffered']
    #allocation3 [shape = 's32[1]{0}', space=sflag, size = 0x4, scoped, tag = 'scoped memory for tpu_custom_call.1']
    #allocation4 [shape = 's32[1]{0}', space=sflag, size = 0x4, scoped, tag = 'scoped memory for tpu_custom_call.1']
    #allocation5 [shape = 'u8[8192]{0}', space=vmem, size = 0x2000, scoped, tag = 'input window, operand 1, single buffered']
    #allocation6 [shape = 's32[1]{0}', space=sflag, size = 0x4, scoped, tag = 'scoped memory for tpu_custom_call.1']
    #allocation7 [shape = 'u8[131072]{0}', space=vmem, size = 0x20000, scoped, tag = 'output window, operand 0, single buffered']
    %7 = vsyncpa [#allocation3], 0
    %8 = vsyncpa [#allocation6], 0
    %9 = vsyncpa [#allocation4], 0
    // Predicated region
    $region2: #{tpu_custom_call.1} parent=1 // pred_check
      _
    $region3: #{tpu_custom_call.1} parent=1 // pred_check_branch
      %11 = sbr.rel (0) target = $region5
    $region4: #{tpu_custom_call.1} parent=1 // pred_region
      %s13 = ssub.s32 2048, 2048
      %14 = vsyncadd [#allocation3], %s13
      %s15 = sshll.u32 [#allocation2], 4
      %s16 = int_to_ptr.vmem [resolvable:$true] %s15
      %21 = dma.hbm_to_vmem [thread:$0]  %s0, 2048, %s16, [#allocation3], 128, 128, 8
    $region5: #{tpu_custom_call.1} parent=1 // pred_fallthru
      _
    // Predicated region
    $region6: #{tpu_custom_call.1} parent=1 // pred_check
      _
    $region7: #{tpu_custom_call.1} parent=1 // pred_check_branch
      %23 = sbr.rel (0) target = $region9
    $region8: #{tpu_custom_call.1} parent=1 // pred_region
      %s25 = ssub.s32 256, 256
      %26 = vsyncadd [#allocation6], %s25
      %s27 = sshll.u32 [#allocation5], 4
      %s28 = int_to_ptr.vmem [resolvable:$true] %s27
      %33 = dma.hbm_to_vmem [thread:$0]  %s1, 256, %s28, [#allocation6], 128, 128, 8
    $region9: #{tpu_custom_call.1} parent=1 // pred_fallthru
      _
    // Predicated region
    $region10: #{tpu_custom_call.1} parent=1 // pred_check
      _
    $region11: #{tpu_custom_call.1} parent=1 // pred_check_branch
      %35 = sbr.rel (0) target = $region13
    $region12: #{tpu_custom_call.1} parent=1 // pred_region
      %36 = dma.done [#allocation3], 2048
    $region13: #{tpu_custom_call.1} parent=1 // pred_fallthru
      _
    // Predicated region
    $region14: #{tpu_custom_call.1} parent=1 // pred_check
      _
    $region15: #{tpu_custom_call.1} parent=1 // pred_check_branch
      %38 = sbr.rel (0) target = $region17
    $region16: #{tpu_custom_call.1} parent=1 // pred_region
      %39 = dma.done [#allocation6], 256
    $region17: #{tpu_custom_call.1} parent=1 // pred_fallthru
      _
    %v40 = vld [vmem:[#allocation2] sm:$0xff]
    %v41 = vld [vmem:[#allocation2 + $0x8] sm:$0xff]
    %v42 = vld [vmem:[#allocation2 + $0x10] sm:$0xff]
    %v43 = vld [vmem:[#allocation2 + $0x18] sm:$0xff]
    %v44 = vld [vmem:[#allocation2 + $0x20] sm:$0xff]
    %v45 = vld [vmem:[#allocation2 + $0x28] sm:$0xff]
    %v46 = vld [vmem:[#allocation2 + $0x30] sm:$0xff]
    %v47 = vld [vmem:[#allocation2 + $0x38] sm:$0xff]
    %v48 = vld [vmem:[#allocation2 + $0x40] sm:$0xff]
    %v49 = vld [vmem:[#allocation2 + $0x48] sm:$0xff]
    %v50 = vld [vmem:[#allocation2 + $0x50] sm:$0xff]
    %v51 = vld [vmem:[#allocation2 + $0x58] sm:$0xff]
    %v52 = vld [vmem:[#allocation2 + $0x60] sm:$0xff]
    %v53 = vld [vmem:[#allocation2 + $0x68] sm:$0xff]
    %v54 = vld [vmem:[#allocation2 + $0x70] sm:$0xff]
    %v55 = vld [vmem:[#allocation2 + $0x78] sm:$0xff]
    %v56 = vld [vmem:[#allocation5] sm:$0xff]
    %v57 = vld [vmem:[#allocation5 + $0x8] sm:$0xff]
    %vm58 = vcmask 130048
    %v60 = vsel %vm58, %v40, 0
    %v63 = vsel %vm58, %v41, 0
    %v66 = vsel %vm58, %v42, 0
    %v69 = vsel %vm58, %v43, 0
    %v72 = vsel %vm58, %v44, 0
    %v75 = vsel %vm58, %v45, 0
    %v78 = vsel %vm58, %v46, 0
    %v81 = vsel %vm58, %v47, 0
    %v84 = vsel %vm58, %v48, 0
    %v87 = vsel %vm58, %v49, 0
    %v90 = vsel %vm58, %v50, 0
    %v93 = vsel %vm58, %v51, 0
    %v96 = vsel %vm58, %v52, 0
    %v99 = vsel %vm58, %v53, 0
    %v102 = vsel %vm58, %v54, 0
    %v105 = vsel %vm58, %v55, 0
    %107 = vmatprep.subr.mxu0 0.0
    %108 = vmatpush1.msra.mxu0 0.0
    %109 = vmatprep.subr.mxu0 0.0
    %110 = vmatpush1.msra.mxu0 0.0
    %111 = vmatprep.subr.mxu0 0.0
    %112 = vmatpush1.msra.mxu0 0.0
    %113 = vmatprep.subr.mxu0 0.0
    %114 = vmatpush1.msra.mxu0 0.0
    %115 = vmatprep.subr.mxu0 0.0
    %116 = vmatpush1.msra.mxu0 0.0
    %117 = vmatprep.subr.mxu0 0.0
    %118 = vmatpush1.msra.mxu0 0.0
    %119 = vmatprep.subr.mxu0 0.0
    %120 = vmatpush1.msra.mxu0 0.0
    %121 = vmatprep.subr.mxu0 0.0
    %122 = vmatpush1.msra.mxu0 0.0
    %123 = vmatprep.subr.mxu0 0.0
    %124 = vmatpush1.msra.mxu0 0.0
    %125 = vmatprep.subr.mxu0 0.0
    %126 = vmatpush1.msra.mxu0 0.0
    %127 = vmatprep.subr.mxu0 0.0
    %128 = vmatpush1.msra.mxu0 0.0
    %129 = vmatprep.subr.mxu0 0.0
    %130 = vmatpush1.msra.mxu0 0.0
    %131 = vmatprep.subr.mxu0 0.0
    %132 = vmatpush1.msra.mxu0 0.0
    %133 = vmatprep.subr.mxu0 0.0
    %134 = vmatpush1.msra.mxu0 0.0
    %135 = vmatprep.subr.mxu0 0.0
    %136 = vmatpush1.msra.mxu0 %v57
    %137 = vmatprep.subr.mxu0 0.0
    %138 = vmatpush1.msra.mxu0 %v56
    %139 = vmatprep.subr.mxu0 0.0
    %140 = vmatpush2.msra.mxu0 0.0
    %141 = vmatprep.subr.mxu0 0.0
    %142 = vmatpush2.msra.mxu0 0.0
    %143 = vmatprep.subr.mxu0 0.0
    %144 = vmatpush2.msra.mxu0 0.0
    %145 = vmatprep.subr.mxu0 0.0
    %146 = vmatpush2.msra.mxu0 0.0
    %147 = vmatprep.subr.mxu0 0.0
    %148 = vmatpush2.msra.mxu0 0.0
    %149 = vmatprep.subr.mxu0 0.0
    %150 = vmatpush2.msra.mxu0 0.0
    %151 = vmatprep.subr.mxu0 0.0
    %152 = vmatpush2.msra.mxu0 0.0
    %153 = vmatprep.subr.mxu0 0.0
    %154 = vmatpush2.msra.mxu0 0.0
    %155 = vmatprep.subr.mxu0 0.0
    %156 = vmatpush2.msra.mxu0 0.0
    %157 = vmatprep.subr.mxu0 0.0
    %158 = vmatpush2.msra.mxu0 0.0
    %159 = vmatprep.subr.mxu0 0.0
    %160 = vmatpush2.msra.mxu0 0.0
    %161 = vmatprep.subr.mxu0 0.0
    %162 = vmatpush2.msra.mxu0 0.0
    %163 = vmatprep.subr.mxu0 0.0
    %164 = vmatpush2.msra.mxu0 0.0
    %165 = vmatprep.subr.mxu0 0.0
    %166 = vmatpush2.msra.mxu0 0.0
    %167 = vmatprep.subr.mxu0 0.0
    %168 = vmatpush2.msra.mxu0 0.0
    %169 = vmatprep.subr.mxu0 0.0
    %170 = vmatpush2.msra.mxu0 0.0
    %171 = vmatprep.mubr.f32.mxu0 0.0
    %172 = vmatmul.mubr.f32.gmra.mxu0 %v60
    %v173 = vpop.f32.mrf.mxu0
    %v174 = vadd.f32 0.0, %v173
    %v175 = vpop.f32.mrf.mxu0
    %176 = vmatprep.mubr.f32.mxu0 0.0
    %177 = vmatmul.mubr.f32.gmra.mxu0 %v63
    %v178 = vpop.f32.mrf.mxu0
    %v179 = vadd.f32 0.0, %v178
    %v180 = vpop.f32.mrf.mxu0
    %181 = vmatprep.mubr.f32.mxu0 0.0
    %182 = vmatmul.mubr.f32.gmra.mxu0 %v66
    %v183 = vpop.f32.mrf.mxu0
    %v184 = vadd.f32 0.0, %v183
    %v185 = vpop.f32.mrf.mxu0
    %186 = vmatprep.mubr.f32.mxu0 0.0
    %187 = vmatmul.mubr.f32.gmra.mxu0 %v69
    %v188 = vpop.f32.mrf.mxu0
    %v189 = vadd.f32 0.0, %v188
    %v190 = vpop.f32.mrf.mxu0
    %191 = vmatprep.mubr.f32.mxu0 0.0
    %192 = vmatmul.mubr.f32.gmra.mxu0 %v72
    %v193 = vpop.f32.mrf.mxu0
    %v194 = vadd.f32 0.0, %v193
    %v195 = vpop.f32.mrf.mxu0
    %196 = vmatprep.mubr.f32.mxu0 0.0
    %197 = vmatmul.mubr.f32.gmra.mxu0 %v75
    %v198 = vpop.f32.mrf.mxu0
    %v199 = vadd.f32 0.0, %v198
    %v200 = vpop.f32.mrf.mxu0
    %201 = vmatprep.mubr.f32.mxu0 0.0
    %202 = vmatmul.mubr.f32.gmra.mxu0 %v78
    %v203 = vpop.f32.mrf.mxu0
    %v204 = vadd.f32 0.0, %v203
    %v205 = vpop.f32.mrf.mxu0
    %206 = vmatprep.mubr.f32.mxu0 0.0
    %207 = vmatmul.mubr.f32.gmra.mxu0 %v81
    %v208 = vpop.f32.mrf.mxu0
    %v209 = vadd.f32 0.0, %v208
    %v210 = vpop.f32.mrf.mxu0
    %211 = vmatprep.mubr.f32.mxu0 0.0
    %212 = vmatmul.mubr.f32.gmra.mxu0 %v84
    %v213 = vpop.f32.mrf.mxu0
    %v214 = vadd.f32 0.0, %v213
    %v215 = vpop.f32.mrf.mxu0
    %216 = vmatprep.mubr.f32.mxu0 0.0
    %217 = vmatmul.mubr.f32.gmra.mxu0 %v87
    %v218 = vpop.f32.mrf.mxu0
    %v219 = vadd.f32 0.0, %v218
    %v220 = vpop.f32.mrf.mxu0
    %221 = vmatprep.mubr.f32.mxu0 0.0
    %222 = vmatmul.mubr.f32.gmra.mxu0 %v90
    %v223 = vpop.f32.mrf.mxu0
    %v224 = vadd.f32 0.0, %v223
    %v225 = vpop.f32.mrf.mxu0
    %226 = vmatprep.mubr.f32.mxu0 0.0
    %227 = vmatmul.mubr.f32.gmra.mxu0 %v93
    %v228 = vpop.f32.mrf.mxu0
    %v229 = vadd.f32 0.0, %v228
    %v230 = vpop.f32.mrf.mxu0
    %231 = vmatprep.mubr.f32.mxu0 0.0
    %232 = vmatmul.mubr.f32.gmra.mxu0 %v96
    %v233 = vpop.f32.mrf.mxu0
    %v234 = vadd.f32 0.0, %v233
    %v235 = vpop.f32.mrf.mxu0
    %236 = vmatprep.mubr.f32.mxu0 0.0
    %237 = vmatmul.mubr.f32.gmra.mxu0 %v99
    %v238 = vpop.f32.mrf.mxu0
    %v239 = vadd.f32 0.0, %v238
    %v240 = vpop.f32.mrf.mxu0
    %241 = vmatprep.mubr.f32.mxu0 0.0
    %242 = vmatmul.mubr.f32.gmra.mxu0 %v102
    %v243 = vpop.f32.mrf.mxu0
    %v244 = vadd.f32 0.0, %v243
    %v245 = vpop.f32.mrf.mxu0
    %246 = vmatprep.mubr.f32.mxu0 0.0
    %247 = vmatmul.mubr.f32.gmra.mxu0 %v105
    %v248 = vpop.f32.mrf.mxu0
    %v249 = vadd.f32 0.0, %v248
    %v250 = vpop.f32.mrf.mxu0
    %251 = vdwg.mxu0
    %268 = vrot.lane.b32.xlu0 %v174, 64
    %v269 = vpop.permute.xlu0 %268
    %270 = vrot.lane.b32.xlu0 %v179, 64
    %v271 = vpop.permute.xlu0 %270
    %272 = vrot.lane.b32.xlu0 %v184, 64
    %v273 = vpop.permute.xlu0 %272
    %274 = vrot.lane.b32.xlu0 %v189, 64
    %v275 = vpop.permute.xlu0 %274
    %276 = vrot.lane.b32.xlu0 %v194, 64
    %v277 = vpop.permute.xlu0 %276
    %278 = vrot.lane.b32.xlu0 %v199, 64
    %v279 = vpop.permute.xlu0 %278
    %280 = vrot.lane.b32.xlu0 %v204, 64
    %v281 = vpop.permute.xlu0 %280
    %282 = vrot.lane.b32.xlu0 %v209, 64
    %v283 = vpop.permute.xlu0 %282
    %284 = vrot.lane.b32.xlu0 %v214, 64
    %v285 = vpop.permute.xlu0 %284
    %286 = vrot.lane.b32.xlu0 %v219, 64
    %v287 = vpop.permute.xlu0 %286
    %288 = vrot.lane.b32.xlu0 %v224, 64
    %v289 = vpop.permute.xlu0 %288
    %290 = vrot.lane.b32.xlu0 %v229, 64
    %v291 = vpop.permute.xlu0 %290
    %292 = vrot.lane.b32.xlu0 %v234, 64
    %v293 = vpop.permute.xlu0 %292
    %294 = vrot.lane.b32.xlu0 %v239, 64
    %v295 = vpop.permute.xlu0 %294
    %296 = vrot.lane.b32.xlu0 %v244, 64
    %v297 = vpop.permute.xlu0 %296
    %298 = vrot.lane.b32.xlu0 %v249, 64
    %v299 = vpop.permute.xlu0 %298
    %vm316 = vcmask 523264
    %v317 = vsel %vm316, %v174, %v269
    %v318 = vsel %vm316, %v179, %v271
    %v319 = vsel %vm316, %v184, %v273
    %v320 = vsel %vm316, %v189, %v275
    %v321 = vsel %vm316, %v194, %v277
    %v322 = vsel %vm316, %v199, %v279
    %v323 = vsel %vm316, %v204, %v281
    %v324 = vsel %vm316, %v209, %v283
    %v325 = vsel %vm316, %v214, %v285
    %v326 = vsel %vm316, %v219, %v287
    %v327 = vsel %vm316, %v224, %v289
    %v328 = vsel %vm316, %v229, %v291
    %v329 = vsel %vm316, %v234, %v293
    %v330 = vsel %vm316, %v239, %v295
    %v331 = vsel %vm316, %v244, %v297
    %v332 = vsel %vm316, %v249, %v299
    %333 = vst [vmem:[#allocation7] sm:$0xff] %v317
    %334 = vst [vmem:[#allocation7 + $0x8] sm:$0xff] %v317
    %335 = vst [vmem:[#allocation7 + $0x10] sm:$0xff] %v318
    %336 = vst [vmem:[#allocation7 + $0x18] sm:$0xff] %v318
    %337 = vst [vmem:[#allocation7 + $0x20] sm:$0xff] %v319
    %338 = vst [vmem:[#allocation7 + $0x28] sm:$0xff] %v319
    %339 = vst [vmem:[#allocation7 + $0x30] sm:$0xff] %v320
    %340 = vst [vmem:[#allocation7 + $0x38] sm:$0xff] %v320
    %341 = vst [vmem:[#allocation7 + $0x40] sm:$0xff] %v321
    %342 = vst [vmem:[#allocation7 + $0x48] sm:$0xff] %v321
    %343 = vst [vmem:[#allocation7 + $0x50] sm:$0xff] %v322
    %344 = vst [vmem:[#allocation7 + $0x58] sm:$0xff] %v322
    %345 = vst [vmem:[#allocation7 + $0x60] sm:$0xff] %v323
    %346 = vst [vmem:[#allocation7 + $0x68] sm:$0xff] %v323
    %347 = vst [vmem:[#allocation7 + $0x70] sm:$0xff] %v324
    %348 = vst [vmem:[#allocation7 + $0x78] sm:$0xff] %v324
    %349 = vst [vmem:[#allocation7 + $0x80] sm:$0xff] %v325
    %350 = vst [vmem:[#allocation7 + $0x88] sm:$0xff] %v325
    %351 = vst [vmem:[#allocation7 + $0x90] sm:$0xff] %v326
    %352 = vst [vmem:[#allocation7 + $0x98] sm:$0xff] %v326
    %353 = vst [vmem:[#allocation7 + $0xa0] sm:$0xff] %v327
    %354 = vst [vmem:[#allocation7 + $0xa8] sm:$0xff] %v327
    %355 = vst [vmem:[#allocation7 + $0xb0] sm:$0xff] %v328
    %356 = vst [vmem:[#allocation7 + $0xb8] sm:$0xff] %v328
    %357 = vst [vmem:[#allocation7 + $0xc0] sm:$0xff] %v329
    %358 = vst [vmem:[#allocation7 + $0xc8] sm:$0xff] %v329
    %359 = vst [vmem:[#allocation7 + $0xd0] sm:$0xff] %v330
    %360 = vst [vmem:[#allocation7 + $0xd8] sm:$0xff] %v330
    %361 = vst [vmem:[#allocation7 + $0xe0] sm:$0xff] %v331
    %362 = vst [vmem:[#allocation7 + $0xe8] sm:$0xff] %v331
    %363 = vst [vmem:[#allocation7 + $0xf0] sm:$0xff] %v332
    %364 = vst [vmem:[#allocation7 + $0xf8] sm:$0xff] %v332
    // Predicated region
    $region18: #{tpu_custom_call.1} parent=1 // pred_check
      _
    $region19: #{tpu_custom_call.1} parent=1 // pred_check_branch
      %366 = sbr.rel (0) target = $region21
    $region20: #{tpu_custom_call.1} parent=1 // pred_region
      %s368 = ssub.s32 4096, 4096
      %369 = vsyncadd [#allocation4], %s368
      %s370 = sshll.u32 [#allocation7], 4
      %s371 = int_to_ptr.vmem [resolvable:$true] %s370
      %376 = dma.vmem_to_hbm [thread:$0]  %s371, 4096, %s2, [#allocation4], 256, 256, 16
    $region21: #{tpu_custom_call.1} parent=1 // pred_fallthru
      _
    // Predicated region
    $region22: #{tpu_custom_call.1} parent=1 // pred_check
      _
    $region23: #{tpu_custom_call.1} parent=1 // pred_check_branch
      %378 = sbr.rel (0) target = $region25
    $region24: #{tpu_custom_call.1} parent=1 // pred_region
      %379 = dma.done [#allocation4], 4096
    $region25: #{tpu_custom_call.1} parent=1 // pred_fallthru
      _
    %380 = vsyncpa [#allocation3], 1
    %381 = vsyncpa [#allocation6], 1
    %382 = vsyncpa [#allocation4], 1

</llo_original>
